<compile_context>
chip_gen: v6e
topology: v6e:2x2x1
jax: 0.10.0
libtpu: 0.0.40
codegen_flags: <defaults>
</compile_context>

<pallas_src>
import functools

import jax
import jax.numpy as jnp
from jax import lax
from jax.experimental import pallas as pl
from jax.experimental.pallas import tpu as pltpu

LANE = 128


def _round_up(x, m):
    return (x + m - 1) // m * m


def head_loss_kernel(ps_ref, ptT_ref, w1_ref, b1_ref, w2_ref, b2_ref, out_ref,
                     *, tq, inv_t, out_scale):
    """One query-row block of the contrastive head.

    ps_ref : (tq, Dp) bf16  student projections for this block
    ptT_ref: (Dp, N)  bf16  pre-normalized, pre-transposed teacher (resident)
    w1/b1/w2/b2             predictor MLP params (weights bf16, biases f32, padded)
    out_ref: (1, 1, LANE)   pre-scaled partial sum of (logsumexp - positive_logit)
    """
    i = pl.program_id(0)

    ps = ps_ref[...]                                       # (tq, Dp) bf16

    # ---- predictor: Linear(D,H) -> ReLU -> Linear(H,D); bf16 operands, f32 acc ----
    h = jnp.dot(ps, w1_ref[...], preferred_element_type=jnp.float32) + b1_ref[...]
    h = jnp.maximum(h, 0.0)
    pred = jnp.dot(h.astype(jnp.bfloat16), w2_ref[...],
                   preferred_element_type=jnp.float32) + b2_ref[...]

    # ---- F.normalize(., dim=1, p=2), torch eps=1e-12; fold 1/t into pred (f32) ----
    pred_ss = jnp.sum(pred * pred, axis=-1, keepdims=True)
    pred_n = pred * (lax.rsqrt(jnp.maximum(pred_ss, 1e-24)) * inv_t)   # (tq, Dp) f32

    # ---- similarity logits for this block: (tq,Dp) @ (Dp,N); 1/t already folded ----
    score = jnp.dot(pred_n.astype(jnp.bfloat16), ptT_ref[...],
                    preferred_element_type=jnp.float32)                # (tq, N) f32

    # ---- positive (diagonal) logit from the score already in hand: iota mask + sum ----
    n = score.shape[1]
    col = lax.broadcasted_iota(jnp.int32, (tq, n), 1)
    row = lax.broadcasted_iota(jnp.int32, (tq, n), 0)
    pos_mask = col == row + i * tq
    diag = jnp.sum(jnp.where(pos_mask, score, 0.0), axis=-1, keepdims=True)  # (tq, 1)

    # ---- cross-entropy rows: logsumexp - positive logit (f32 softmax path) ----
    m = jnp.max(score, axis=-1, keepdims=True)
    lse = m + jnp.log(jnp.sum(jnp.exp(score - m), axis=-1, keepdims=True))

    partial = jnp.sum(lse - diag, axis=0, keepdims=True) * out_scale   # (1, 1)
    out_ref[...] = jnp.broadcast_to(partial.reshape(1, 1, 1), (1, 1, LANE))


def head_loss(proj_s, proj_t, w1, b1, w2, b2, *, temperature=0.07, ct_weight=1.0):
    # Glue: squeeze(dim=1) as in the PyTorch forward.
    ps = jnp.squeeze(proj_s, axis=1).astype(jnp.float32)   # (N, D)
    pt = jnp.squeeze(proj_t, axis=1).astype(jnp.float32)   # (N, D)
    # TODO(synk): concat_all_gather is a multi-device all-gather (no grad); on a
    # single device it is the identity, which is what is implemented here.

    N, D = ps.shape
    H = w1.shape[1]
    assert N % 8 == 0, "batch must be a multiple of 8 (sublane) for this kernel"

    Dp = _round_up(D, LANE)
    Hp = _round_up(H, LANE)

    # Teacher: normalize ONCE here (was redundantly re-done every grid step), pad,
    # pre-transpose to a lane-dense (Dp, N) RHS, and cast to bf16 for the MXU.
    pt_n = pt * lax.rsqrt(jnp.maximum(jnp.sum(pt * pt, axis=1, keepdims=True), 1e-24))
    ptT = jnp.pad(pt_n, ((0, 0), (0, Dp - D))).T.astype(jnp.bfloat16)      # (Dp, N)

    # Student rows + predictor weights in bf16; biases stay f32 (added post-matmul).
    ps_p = jnp.pad(ps, ((0, 0), (0, Dp - D))).astype(jnp.bfloat16)         # (N, Dp)
    w1_p = jnp.pad(w1.astype(jnp.float32), ((0, Dp - D), (0, Hp - H))).astype(jnp.bfloat16)
    b1_p = jnp.pad(b1.astype(jnp.float32).reshape(1, H), ((0, 0), (0, Hp - H)))
    w2_p = jnp.pad(w2.astype(jnp.float32), ((0, Hp - H), (0, Dp - D))).astype(jnp.bfloat16)
    b2_p = jnp.pad(b2.astype(jnp.float32).reshape(1, D), ((0, 0), (0, Dp - D)))

    # Query-row-block grid; tq up to 256 fills the 256x256 MXU on v6e/v7x and halves
    # the number of grid steps vs. 128, while adapting down for small batches.
    tq = next(t for t in (256, 128, 64, 32, 16, 8) if N % t == 0)
    grid = (N // tq,)

    out_scale = float(ct_weight) * 2.0 * float(temperature) / float(N)
    kernel = functools.partial(
        head_loss_kernel, tq=tq, inv_t=1.0 / float(temperature), out_scale=out_scale)

    # Explicit VMEM budget: 2x the (grid-invariant) residents for pipeline buffering
    # plus the f32 (tq,N) score/exp/mask temporaries, clamped to [32 MiB, 64 MiB] so it
    # is never tighter than the default and always within v7x's per-core VMEM.
    bytes_resident = (Dp * N * 2 + Dp * Hp * 2 + Hp * Dp * 2
                      + Hp * 4 + Dp * 4 + tq * Dp * 2 + LANE * 4)
    bytes_temps = 6 * tq * N * 4 + 4 * tq * max(Dp, Hp) * 4
    vmem_limit = int(min(max(2 * bytes_resident + bytes_temps + (8 << 20), 32 << 20),
                         64 << 20))
    # TODO(synk): for very large all-gathered N (>~8-16K) add an "arbitrary" teacher-
    # column grid axis with an online softmax instead of keeping ptT fully resident.

    partials = pl.pallas_call(
        kernel,
        grid=grid,
        out_shape=jax.ShapeDtypeStruct((grid[0], 1, LANE), jnp.float32),
        in_specs=[
            pl.BlockSpec((tq, Dp), lambda i: (i, 0)),    # student rows for this block
            pl.BlockSpec((Dp, N), lambda i: (0, 0)),     # pre-normalized teacher^T
            pl.BlockSpec((Dp, Hp), lambda i: (0, 0)),    # w1
            pl.BlockSpec((1, Hp), lambda i: (0, 0)),     # b1
            pl.BlockSpec((Hp, Dp), lambda i: (0, 0)),    # w2
            pl.BlockSpec((1, Dp), lambda i: (0, 0)),     # b2
        ],
        out_specs=pl.BlockSpec((1, 1, LANE), lambda i: (i, 0, 0)),
        compiler_params=pltpu.CompilerParams(
            dimension_semantics=("parallel",),
            vmem_limit_bytes=vmem_limit),
    )(ps_p, ptT, w1_p, b1_p, w2_p, b2_p)

    # Combine per-block partial sums (already scaled by ct_weight*2*t/N).
    return jnp.sum(partials[:, 0, 0])


def _reference_loss(proj_s, proj_t, w1, b1, w2, b2, temperature=0.07, ct_weight=1.0):
    # Pure-JAX f32 reference for a silent correctness check.
    ps = jnp.squeeze(proj_s, axis=1)
    pt = jnp.squeeze(proj_t, axis=1)
    h = jnp.maximum(ps @ w1 + b1, 0.0)
    pred = h @ w2 + b2
    pred = pred / jnp.maximum(jnp.linalg.norm(pred, axis=1, keepdims=True), 1e-12)
    pt = pt / jnp.maximum(jnp.linalg.norm(pt, axis=1, keepdims=True), 1e-12)
    score = (pred @ pt.T) / temperature
    labels = jnp.arange(score.shape[0])
    logp = jax.nn.log_softmax(score, axis=-1)
    ce = -jnp.mean(logp[jnp.arange(score.shape[0]), labels])
    return ct_weight * 2.0 * temperature * ce


if __name__ == "__main__":
    key = jax.random.PRNGKey(0)
    k1, k2, k3, k4 = jax.random.split(key, 4)

    N, D, H = 8, 32, 64                       # batch, feature dim, predictor hidden
    proj_s = jax.random.normal(k1, (N, 1, D), jnp.float32)
    proj_t = jax.random.normal(k2, (N, 1, D), jnp.float32)

    # Deterministic predictor parameters (fan-in scaled).
    w1 = jax.random.normal(k3, (D, H), jnp.float32) * (1.0 / jnp.sqrt(D))
    b1 = jnp.zeros((1, H), jnp.float32)
    w2 = jax.random.normal(k4, (H, D), jnp.float32) * (1.0 / jnp.sqrt(H))
    b2 = jnp.zeros((1, D), jnp.float32)

    loss = head_loss(proj_s, proj_t, w1, b1, w2, b2, temperature=0.07, ct_weight=1.0)
    loss = jax.block_until_ready(loss)

    ref = _reference_loss(proj_s, proj_t, w1, b1, w2, b2)
    # bf16 matmul operands on the MXU -> looser tolerance than the pure-f32 path.
    assert jnp.allclose(loss, ref, rtol=5e-2, atol=3e-2), (loss, ref)

    print("KERNEL_OK")
</pallas_src>

<mosaic_0001>
module attributes {stable_mosaic.version = 11 : i64} {
  func.func @head_loss_kernel(%arg0: i32, %arg1: memref<8x128xbf16, #tpu.memory_space<vmem>>, %arg2: memref<128x8xbf16, #tpu.memory_space<vmem>>, %arg3: memref<128x128xbf16, #tpu.memory_space<vmem>>, %arg4: memref<1x128xf32, #tpu.memory_space<vmem>>, %arg5: memref<128x128xbf16, #tpu.memory_space<vmem>>, %arg6: memref<1x128xf32, #tpu.memory_space<vmem>>, %arg7: memref<1x1x128xf32, #tpu.memory_space<vmem>>) attributes {dimension_semantics = [#tpu.dimension_semantics<parallel>], iteration_bounds = array<i64: 1>, scalar_prefetch = 0 : i64, scratch_operands = 0 : i64, tpu.core_type = #tpu.core_type<tc>, window_params = [{transform_indices = @transform_0, window_bounds = array<i64: 8, 128>}, {pipeline_mode = #tpu.pipeline_mode<synchronous>, transform_indices = @transform_1, window_bounds = array<i64: 128, 8>}, {pipeline_mode = #tpu.pipeline_mode<synchronous>, transform_indices = @transform_2, window_bounds = array<i64: 128, 128>}, {pipeline_mode = #tpu.pipeline_mode<synchronous>, transform_indices = @transform_3, window_bounds = array<i64: 1, 128>}, {pipeline_mode = #tpu.pipeline_mode<synchronous>, transform_indices = @transform_4, window_bounds = array<i64: 128, 128>}, {pipeline_mode = #tpu.pipeline_mode<synchronous>, transform_indices = @transform_5, window_bounds = array<i64: 1, 128>}, {transform_indices = @transform_6, window_bounds = array<i64: 1, 1, 128>}]} {
    %c0 = arith.constant 0 : index
    %c0_0 = arith.constant 0 : index
    %0 = vector.load %arg1[%c0, %c0_0] : memref<8x128xbf16, #tpu.memory_space<vmem>>, vector<8x128xbf16>
    %c0_1 = arith.constant 0 : index
    %c0_2 = arith.constant 0 : index
    %1 = vector.load %arg3[%c0_1, %c0_2] : memref<128x128xbf16, #tpu.memory_space<vmem>>, vector<128x128xbf16>
    %cst = arith.constant dense<0.000000e+00> : vector<8x128xf32>
    %2 = tpu.matmul %0, %1, %cst {dimension_numbers = #tpu.dot_dimension_numbers<[1], [0], [0], [1], [0, 0, 1, 1], [], []>} : vector<8x128xbf16>, vector<128x128xbf16>, vector<8x128xf32> -> vector<8x128xf32>
    %c0_3 = arith.constant 0 : index
    %c0_4 = arith.constant 0 : index
    %3 = vector.load %arg4[%c0_3, %c0_4] : memref<1x128xf32, #tpu.memory_space<vmem>>, vector<1x128xf32>
    %4 = vector.broadcast %3 : vector<1x128xf32> to vector<8x128xf32>
    %5 = arith.addf %2, %4 : vector<8x128xf32>
    %cst_5 = arith.constant 0.000000e+00 : f32
    %6 = vector.broadcast %cst_5 : f32 to vector<8x128xf32>
    %7 = arith.maximumf %5, %6 : vector<8x128xf32>
    %8 = arith.truncf %7 : vector<8x128xf32> to vector<8x128xbf16>
    %c0_6 = arith.constant 0 : index
    %c0_7 = arith.constant 0 : index
    %9 = vector.load %arg5[%c0_6, %c0_7] : memref<128x128xbf16, #tpu.memory_space<vmem>>, vector<128x128xbf16>
    %cst_8 = arith.constant dense<0.000000e+00> : vector<8x128xf32>
    %10 = tpu.matmul %8, %9, %cst_8 {dimension_numbers = #tpu.dot_dimension_numbers<[1], [0], [0], [1], [0, 0, 1, 1], [], []>} : vector<8x128xbf16>, vector<128x128xbf16>, vector<8x128xf32> -> vector<8x128xf32>
    %c0_9 = arith.constant 0 : index
    %c0_10 = arith.constant 0 : index
    %11 = vector.load %arg6[%c0_9, %c0_10] : memref<1x128xf32, #tpu.memory_space<vmem>>, vector<1x128xf32>
    %12 = vector.broadcast %11 : vector<1x128xf32> to vector<8x128xf32>
    %13 = arith.addf %10, %12 : vector<8x128xf32>
    %14 = arith.mulf %13, %13 : vector<8x128xf32>
    %cst_11 = arith.constant dense<0.000000e+00> : vector<8xf32>
    %15 = vector.multi_reduction <add>, %14, %cst_11 [1] : vector<8x128xf32> to vector<8xf32>
    %16 = vector.shape_cast %15 : vector<8xf32> to vector<8x1xf32>
    %cst_12 = arith.constant 1.000000e-24 : f32
    %17 = vector.broadcast %cst_12 : f32 to vector<8x1xf32>
    %18 = arith.maximumf %16, %17 : vector<8x1xf32>
    %19 = math.rsqrt %18 : vector<8x1xf32>
    %cst_13 = arith.constant 14.2857141 : f32
    %20 = vector.broadcast %cst_13 : f32 to vector<8x1xf32>
    %21 = arith.mulf %19, %20 : vector<8x1xf32>
    %22 = vector.broadcast %21 : vector<8x1xf32> to vector<8x128xf32>
    %23 = arith.mulf %13, %22 : vector<8x128xf32>
    %24 = arith.truncf %23 : vector<8x128xf32> to vector<8x128xbf16>
    %c0_14 = arith.constant 0 : index
    %c0_15 = arith.constant 0 : index
    %25 = vector.load %arg2[%c0_14, %c0_15] : memref<128x8xbf16, #tpu.memory_space<vmem>>, vector<128x8xbf16>
    %cst_16 = arith.constant dense<0.000000e+00> : vector<8x8xf32>
    %26 = tpu.matmul %24, %25, %cst_16 {dimension_numbers = #tpu.dot_dimension_numbers<[1], [0], [0], [1], [0, 0, 1, 1], [], []>} : vector<8x128xbf16>, vector<128x8xbf16>, vector<8x8xf32> -> vector<8x8xf32>
    %27 = tpu.iota {dimensions = array<i32: 1>} : vector<8x8xi32>
    %28 = tpu.iota {dimensions = array<i32: 0>} : vector<8x8xi32>
    %c8_i32 = arith.constant 8 : i32
    %29 = arith.muli %arg0, %c8_i32 : i32
    %30 = vector.broadcast %29 : i32 to vector<8x8xi32>
    %31 = arith.addi %28, %30 : vector<8x8xi32>
    %32 = arith.cmpi eq, %27, %31 : vector<8x8xi32>
    %cst_17 = arith.constant 0.000000e+00 : f32
    %33 = vector.broadcast %cst_17 : f32 to vector<8x8xf32>
    %34 = arith.select %32, %26, %33 : vector<8x8xi1>, vector<8x8xf32>
    %cst_18 = arith.constant dense<0.000000e+00> : vector<8xf32>
    %35 = vector.multi_reduction <add>, %34, %cst_18 [1] : vector<8x8xf32> to vector<8xf32>
    %36 = vector.shape_cast %35 : vector<8xf32> to vector<8x1xf32>
    %cst_19 = arith.constant dense<0xFF800000> : vector<8xf32>
    %37 = vector.multi_reduction <maximumf>, %26, %cst_19 [1] : vector<8x8xf32> to vector<8xf32>
    %38 = vector.shape_cast %37 : vector<8xf32> to vector<8x1xf32>
    %39 = vector.broadcast %38 : vector<8x1xf32> to vector<8x8xf32>
    %40 = arith.subf %26, %39 : vector<8x8xf32>
    %41 = math.exp %40 : vector<8x8xf32>
    %cst_20 = arith.constant dense<0.000000e+00> : vector<8xf32>
    %42 = vector.multi_reduction <add>, %41, %cst_20 [1] : vector<8x8xf32> to vector<8xf32>
    %43 = vector.shape_cast %42 : vector<8xf32> to vector<8x1xf32>
    %44 = math.log %43 : vector<8x1xf32>
    %45 = arith.addf %38, %44 : vector<8x1xf32>
    %46 = arith.subf %45, %36 : vector<8x1xf32>
    %cst_21 = arith.constant dense<0.000000e+00> : vector<1xf32>
    %47 = vector.multi_reduction <add>, %46, %cst_21 [0] : vector<8x1xf32> to vector<1xf32>
    %48 = vector.shape_cast %47 : vector<1xf32> to vector<1x1xf32>
    %cst_22 = arith.constant 1.750000e-02 : f32
    %49 = vector.broadcast %cst_22 : f32 to vector<1x1xf32>
    %50 = arith.mulf %48, %49 : vector<1x1xf32>
    %51 = vector.shape_cast %50 : vector<1x1xf32> to vector<1x1x1xf32>
    %52 = vector.shape_cast %51 : vector<1x1x1xf32> to vector<1x1x1xf32>
    %53 = vector.broadcast %52 : vector<1x1x1xf32> to vector<1x1x128xf32>
    %c0_23 = arith.constant 0 : index
    %c0_24 = arith.constant 0 : index
    %c0_25 = arith.constant 0 : index
    %54 = vector.load %arg7[%c0_23, %c0_24, %c0_25] : memref<1x1x128xf32, #tpu.memory_space<vmem>>, vector<1x1x128xf32>
    tpu.vector_store %arg7[%c0_23, %c0_24, %c0_25], %53 {strides = array<i32>} : memref<1x1x128xf32, #tpu.memory_space<vmem>>, vector<1x1x128xf32>,
    return
  }
  func.func @transform_0(%arg0: i32) -> (i32, i32) {
    %c0_i32 = arith.constant 0 : i32
    %c0_i32_0 = arith.constant 0 : i32
    return %arg0, %c0_i32 : i32, i32
  }
  func.func @transform_1(%arg0: i32) -> (i32, i32) {
    %c0_i32 = arith.constant 0 : i32
    %c0_i32_0 = arith.constant 0 : i32
    %c0_i32_1 = arith.constant 0 : i32
    return %c0_i32, %c0_i32_0 : i32, i32
  }
  func.func @transform_2(%arg0: i32) -> (i32, i32) {
    %c0_i32 = arith.constant 0 : i32
    %c0_i32_0 = arith.constant 0 : i32
    %c0_i32_1 = arith.constant 0 : i32
    return %c0_i32, %c0_i32_0 : i32, i32
  }
  func.func @transform_3(%arg0: i32) -> (i32, i32) {
    %c0_i32 = arith.constant 0 : i32
    %c0_i32_0 = arith.constant 0 : i32
    %c0_i32_1 = arith.constant 0 : i32
    return %c0_i32, %c0_i32_0 : i32, i32
  }
  func.func @transform_4(%arg0: i32) -> (i32, i32) {
    %c0_i32 = arith.constant 0 : i32
    %c0_i32_0 = arith.constant 0 : i32
    %c0_i32_1 = arith.constant 0 : i32
    return %c0_i32, %c0_i32_0 : i32, i32
  }
  func.func @transform_5(%arg0: i32) -> (i32, i32) {
    %c0_i32 = arith.constant 0 : i32
    %c0_i32_0 = arith.constant 0 : i32
    %c0_i32_1 = arith.constant 0 : i32
    return %c0_i32, %c0_i32_0 : i32, i32
  }
  func.func @transform_6(%arg0: i32) -> (i32, i32, i32) {
    %c0_i32 = arith.constant 0 : i32
    %c0_i32_0 = arith.constant 0 : i32
    %c0_i32_1 = arith.constant 0 : i32
    return %arg0, %c0_i32, %c0_i32_0 : i32, i32, i32
  }
}

</mosaic_0001>

<llo_original>
// kernel: tpu_custom_call.1
$region0: #{tpu_custom_call.1}
  #allocation0 [shape = 'u32[]', space=smem, size = 0x4, offset = 0x4, fixed_abs, tag = 'smem constant byte address 0x4 - core index']
  #allocation1 [shape = 'u32[144,128]{1,0:T(1,128)}', space=vmem, size = 0x12000, scoped, tag = 'internal scratch']
  %s0 = inlined_call_operand.vmem [shape: bf16[8,128], index: 0, kind: input, shape index: {}]
  %s1 = inlined_call_operand.vmem [shape: bf16[128,8], index: 1, kind: input, shape index: {}]
  %s2 = inlined_call_operand.vmem [shape: bf16[128,128], index: 2, kind: input, shape index: {}]
  %s3 = inlined_call_operand.vmem [shape: f32[1,128], index: 3, kind: input, shape index: {}]
  %s4 = inlined_call_operand.hbm [shape: bf16[128,128], index: 4, kind: input, shape index: {}]
  %s5 = inlined_call_operand.vmem [shape: f32[1,128], index: 5, kind: input, shape index: {}]
  %s6 = inlined_call_operand.hbm [shape: f32[1,1,128], index: 6, kind: output, shape index: {}]
  %s7 = sld [smem:[#allocation0]]
  $region38: #{tpu_custom_call.1} parent=0
    _
  %s9 = ssub.s32 1, %s7
  %s10 = scalar_select 0, %s9, %s7
  $region1: #{tpu_custom_call.1} parent=0
    #allocation2 [shape = 'u8[32768]{0}', space=vmem, size = 0x8000, scoped, tag = 'input window, operand 4, single buffered']
    #allocation3 [shape = 's32[1]{0}', space=sflag, size = 0x4, scoped, tag = 'scoped memory for tpu_custom_call.1']
    #allocation4 [shape = 's32[1]{0}', space=sflag, size = 0x4, scoped, tag = 'scoped memory for tpu_custom_call.1']
    #allocation5 [shape = 'u8[512]{0}', space=vmem, size = 0x400, scoped, tag = 'output window, operand 0, single buffered']
    %11 = vsyncpa [#allocation3], 0
    %12 = vsyncpa [#allocation4], 0
    // Predicated region
    $region2: #{tpu_custom_call.1} parent=1 // pred_check
      _
    $region3: #{tpu_custom_call.1} parent=1 // pred_check_branch
      %14 = sbr.rel (0) target = $region5
    $region4: #{tpu_custom_call.1} parent=1 // pred_region
      _
    $region5: #{tpu_custom_call.1} parent=1 // pred_fallthru
      _
    // Predicated region
    $region6: #{tpu_custom_call.1} parent=1 // pred_check
      _
    $region7: #{tpu_custom_call.1} parent=1 // pred_check_branch
      %16 = sbr.rel (0) target = $region9
    $region8: #{tpu_custom_call.1} parent=1 // pred_region
      _
    $region9: #{tpu_custom_call.1} parent=1 // pred_fallthru
      _
    // Predicated region
    $region10: #{tpu_custom_call.1} parent=1 // pred_check
      _
    $region11: #{tpu_custom_call.1} parent=1 // pred_check_branch
      %18 = sbr.rel (0) target = $region13
    $region12: #{tpu_custom_call.1} parent=1 // pred_region
      _
    $region13: #{tpu_custom_call.1} parent=1 // pred_fallthru
      _
    // Predicated region
    $region14: #{tpu_custom_call.1} parent=1 // pred_check
      _
    $region15: #{tpu_custom_call.1} parent=1 // pred_check_branch
      %20 = sbr.rel (0) target = $region17
    $region16: #{tpu_custom_call.1} parent=1 // pred_region
      _
    $region17: #{tpu_custom_call.1} parent=1 // pred_fallthru
      _
    // Predicated region
    $region18: #{tpu_custom_call.1} parent=1 // pred_check
      _
    $region19: #{tpu_custom_call.1} parent=1 // pred_check_branch
      %22 = sbr.rel (0) target = $region21
    $region20: #{tpu_custom_call.1} parent=1 // pred_region
      %s24 = ssub.s32 1024, 1024
      %25 = vsyncadd [#allocation3], %s24
      %s26 = sshll.u32 [#allocation2], 4
      %s27 = int_to_ptr.vmem [resolvable:$true] %s26
      %32 = dma.hbm_to_vmem [thread:$0]  %s4, 1024, %s27, [#allocation3], 64, 64, 4
    $region21: #{tpu_custom_call.1} parent=1 // pred_fallthru
      _
    // Predicated region
    $region22: #{tpu_custom_call.1} parent=1 // pred_check
      _
    $region23: #{tpu_custom_call.1} parent=1 // pred_check_branch
      %34 = sbr.rel (0) target = $region25
    $region24: #{tpu_custom_call.1} parent=1 // pred_region
      _
    $region25: #{tpu_custom_call.1} parent=1 // pred_fallthru
      _
    // Predicated region
    $region26: #{tpu_custom_call.1} parent=1 // pred_check
      _
    $region27: #{tpu_custom_call.1} parent=1 // pred_check_branch
      %36 = sbr.rel (0) target = $region29
    $region28: #{tpu_custom_call.1} parent=1 // pred_region
      %37 = dma.done [#allocation3], 1024
    $region29: #{tpu_custom_call.1} parent=1 // pred_fallthru
      _
    %v39 = vld [vmem:[%s0] sm:$0xf]
    %v40 = vld [vmem:[%s2] sm:$0xf]
    %v41 = vld [vmem:[%s2 + $0x4] sm:$0xf]
    %v42 = vld [vmem:[%s2 + $0x8] sm:$0xf]
    %v43 = vld [vmem:[%s2 + $0xc] sm:$0xf]
    %v44 = vld [vmem:[%s2 + $0x10] sm:$0xf]
    %v45 = vld [vmem:[%s2 + $0x14] sm:$0xf]
    %v46 = vld [vmem:[%s2 + $0x18] sm:$0xf]
    %v47 = vld [vmem:[%s2 + $0x1c] sm:$0xf]
    %v48 = vld [vmem:[%s2 + $0x20] sm:$0xf]
    %v49 = vld [vmem:[%s2 + $0x24] sm:$0xf]
    %v50 = vld [vmem:[%s2 + $0x28] sm:$0xf]
    %v51 = vld [vmem:[%s2 + $0x2c] sm:$0xf]
    %v52 = vld [vmem:[%s2 + $0x30] sm:$0xf]
    %v53 = vld [vmem:[%s2 + $0x34] sm:$0xf]
    %v54 = vld [vmem:[%s2 + $0x38] sm:$0xf]
    %v55 = vld [vmem:[%s2 + $0x3c] sm:$0xf]
    %v56 = vld [vmem:[%s3] sm:$0x1]
    %v58 = vlaneseq
    %v59 = vshrl.u32 %v58, 7
    %v60 = vsub.s32 0, %v59
    %v61 = vrot.slane %v56, %v60
    %v79 = vunpack.c.l.b16 %v40
    %v80 = vunpack.c.l.b16 %v41
    %v81 = vunpack.c.l.b16 %v42
    %v82 = vunpack.c.l.b16 %v43
    %v83 = vunpack.c.l.b16 %v44
    %v84 = vunpack.c.l.b16 %v45
    %v85 = vunpack.c.l.b16 %v46
    %v86 = vunpack.c.l.b16 %v47
    %v87 = vunpack.c.l.b16 %v48
    %v88 = vunpack.c.l.b16 %v49
    %v89 = vunpack.c.l.b16 %v50
    %v90 = vunpack.c.l.b16 %v51
    %v91 = vunpack.c.l.b16 %v52
    %v92 = vunpack.c.l.b16 %v53
    %v93 = vunpack.c.l.b16 %v54
    %v94 = vunpack.c.l.b16 %v55
    %v95 = vpack.c.b16 %v80, %v79
    %v96 = vpack.c.b16 %v82, %v81
    %v97 = vpack.c.b16 %v84, %v83
    %v98 = vpack.c.b16 %v86, %v85
    %v99 = vpack.c.b16 %v88, %v87
    %v100 = vpack.c.b16 %v90, %v89
    %v101 = vpack.c.b16 %v92, %v91
    %v102 = vpack.c.b16 %v94, %v93
    %111 = vmatprep.subr.bf16.mxu0 0
    %112 = vmatpush1.bf16.msra.mxu0 %v102
    %113 = vmatprep.subr.bf16.mxu0 0
    %114 = vmatpush1.bf16.msra.mxu0 %v101
    %115 = vmatprep.subr.bf16.mxu0 0
    %116 = vmatpush1.bf16.msra.mxu0 %v100
    %117 = vmatprep.subr.bf16.mxu0 0
    %118 = vmatpush1.bf16.msra.mxu0 %v99
    %119 = vmatprep.subr.bf16.mxu0 0
    %120 = vmatpush1.bf16.msra.mxu0 %v98
    %121 = vmatprep.subr.bf16.mxu0 0
    %122 = vmatpush1.bf16.msra.mxu0 %v97
    %123 = vmatprep.subr.bf16.mxu0 0
    %124 = vmatpush1.bf16.msra.mxu0 %v96
    %125 = vmatprep.subr.bf16.mxu0 0
    %126 = vmatpush1.bf16.msra.mxu0 %v95
    %127 = vmatprep.subr.bf16.mxu0 0
    %128 = vmatpush2.bf16.msra.mxu0 0
    %129 = vmatprep.subr.bf16.mxu0 0
    %130 = vmatpush2.bf16.msra.mxu0 0
    %131 = vmatprep.subr.bf16.mxu0 0
    %132 = vmatpush2.bf16.msra.mxu0 0
    %133 = vmatprep.subr.bf16.mxu0 0
    %134 = vmatpush2.bf16.msra.mxu0 0
    %135 = vmatprep.subr.bf16.mxu0 0
    %136 = vmatpush2.bf16.msra.mxu0 0
    %137 = vmatprep.subr.bf16.mxu0 0
    %138 = vmatpush2.bf16.msra.mxu0 0
    %139 = vmatprep.subr.bf16.mxu0 0
    %140 = vmatpush2.bf16.msra.mxu0 0
    %141 = vmatprep.subr.bf16.mxu0 0
    %142 = vmatpush2.bf16.msra.mxu0 0
    %143 = vmatprep.mubr.bf16.mxu0 0
    %144 = vmatmul.mubr.bf16.gmra.mxu0 %v39
    %v145 = vpop.f32.mrf.mxu0
    %v146 = vadd.f32 %v61, %v145
    %v147 = vpop.f32.mrf.mxu0
    %v148 = vpop.f32.mrf.mxu0
    %v149 = vpop.f32.mrf.mxu0
    %150 = vdwg.mxu0
    %v151 = vmax.f32 %v146, 0.0
    %v152 = vpack.c.bf16 %v151, %v151
    %v153 = vld [vmem:[#allocation2] sm:$0xf]
    %v154 = vld [vmem:[#allocation2 + $0x4] sm:$0xf]
    %v155 = vld [vmem:[#allocation2 + $0x8] sm:$0xf]
    %v156 = vld [vmem:[#allocation2 + $0xc] sm:$0xf]
    %v157 = vld [vmem:[#allocation2 + $0x10] sm:$0xf]
    %v158 = vld [vmem:[#allocation2 + $0x14] sm:$0xf]
    %v159 = vld [vmem:[#allocation2 + $0x18] sm:$0xf]
    %v160 = vld [vmem:[#allocation2 + $0x1c] sm:$0xf]
    %v161 = vld [vmem:[#allocation2 + $0x20] sm:$0xf]
    %v162 = vld [vmem:[#allocation2 + $0x24] sm:$0xf]
    %v163 = vld [vmem:[#allocation2 + $0x28] sm:$0xf]
    %v164 = vld [vmem:[#allocation2 + $0x2c] sm:$0xf]
    %v165 = vld [vmem:[#allocation2 + $0x30] sm:$0xf]
    %v166 = vld [vmem:[#allocation2 + $0x34] sm:$0xf]
    %v167 = vld [vmem:[#allocation2 + $0x38] sm:$0xf]
    %v168 = vld [vmem:[#allocation2 + $0x3c] sm:$0xf]
    %v169 = vld [vmem:[%s5] sm:$0x1]
    %v171 = vlaneseq
    %v172 = vshrl.u32 %v171, 7
    %v173 = vsub.s32 0, %v172
    %v174 = vrot.slane %v169, %v173
    %v192 = vunpack.c.l.b16 %v153
    %v193 = vunpack.c.l.b16 %v154
    %v194 = vunpack.c.l.b16 %v155
    %v195 = vunpack.c.l.b16 %v156
    %v196 = vunpack.c.l.b16 %v157
    %v197 = vunpack.c.l.b16 %v158
    %v198 = vunpack.c.l.b16 %v159
    %v199 = vunpack.c.l.b16 %v160
    %v200 = vunpack.c.l.b16 %v161
    %v201 = vunpack.c.l.b16 %v162
    %v202 = vunpack.c.l.b16 %v163
    %v203 = vunpack.c.l.b16 %v164
    %v204 = vunpack.c.l.b16 %v165
    %v205 = vunpack.c.l.b16 %v166
    %v206 = vunpack.c.l.b16 %v167
    %v207 = vunpack.c.l.b16 %v168
    %v208 = vpack.c.b16 %v193, %v192
    %v209 = vpack.c.b16 %v195, %v194
    %v210 = vpack.c.b16 %v197, %v196
    %v211 = vpack.c.b16 %v199, %v198
    %v212 = vpack.c.b16 %v201, %v200
    %v213 = vpack.c.b16 %v203, %v202
    %v214 = vpack.c.b16 %v205, %v204
    %v215 = vpack.c.b16 %v207, %v206
    %224 = vmatprep.subr.bf16.mxu0 0
    %225 = vmatpush1.bf16.msra.mxu0 %v215
    %226 = vmatprep.subr.bf16.mxu0 0
    %227 = vmatpush1.bf16.msra.mxu0 %v214
    %228 = vmatprep.subr.bf16.mxu0 0
    %229 = vmatpush1.bf16.msra.mxu0 %v213
    %230 = vmatprep.subr.bf16.mxu0 0
    %231 = vmatpush1.bf16.msra.mxu0 %v212
    %232 = vmatprep.subr.bf16.mxu0 0
    %233 = vmatpush1.bf16.msra.mxu0 %v211
    %234 = vmatprep.subr.bf16.mxu0 0
    %235 = vmatpush1.bf16.msra.mxu0 %v210
    %236 = vmatprep.subr.bf16.mxu0 0
    %237 = vmatpush1.bf16.msra.mxu0 %v209
    %238 = vmatprep.subr.bf16.mxu0 0
    %239 = vmatpush1.bf16.msra.mxu0 %v208
    %240 = vmatprep.subr.bf16.mxu0 0
    %241 = vmatpush2.bf16.msra.mxu0 0
    %242 = vmatprep.subr.bf16.mxu0 0
    %243 = vmatpush2.bf16.msra.mxu0 0
    %244 = vmatprep.subr.bf16.mxu0 0
    %245 = vmatpush2.bf16.msra.mxu0 0
    %246 = vmatprep.subr.bf16.mxu0 0
    %247 = vmatpush2.bf16.msra.mxu0 0
    %248 = vmatprep.subr.bf16.mxu0 0
    %249 = vmatpush2.bf16.msra.mxu0 0
    %250 = vmatprep.subr.bf16.mxu0 0
    %251 = vmatpush2.bf16.msra.mxu0 0
    %252 = vmatprep.subr.bf16.mxu0 0
    %253 = vmatpush2.bf16.msra.mxu0 0
    %254 = vmatprep.subr.bf16.mxu0 0
    %255 = vmatpush2.bf16.msra.mxu0 0
    %256 = vmatprep.mubr.bf16.mxu0 0
    %257 = vmatmul.mubr.bf16.gmra.mxu0 %v152
    %v258 = vpop.f32.mrf.mxu0
    %v259 = vadd.f32 %v174, %v258
    %v260 = vpop.f32.mrf.mxu0
    %v261 = vpop.f32.mrf.mxu0
    %v262 = vpop.f32.mrf.mxu0
    %263 = vdwg.mxu0
    %v264 = vmul.f32 %v259, %v259
    %265 = vadd.xlane.f32.xlu0 %v264
    %v266 = vpop.xlane.xlu0 %265
    %v267 = vmax.f32 %v266, 1e-24
    %v268 = vrsqrt.pop %v267
    %v269 = vmul.f32 %v268, 14.285714
    %v270 = vmul.f32 %v259, %v269
    %v271 = vpack.c.bf16 %v270, %v270
    %v272 = vld [vmem:[%s1] sm:$0xf]
    %v273 = vld [vmem:[%s1 + $0x4] sm:$0xf]
    %v274 = vld [vmem:[%s1 + $0x8] sm:$0xf]
    %v275 = vld [vmem:[%s1 + $0xc] sm:$0xf]
    %v276 = vld [vmem:[%s1 + $0x10] sm:$0xf]
    %v277 = vld [vmem:[%s1 + $0x14] sm:$0xf]
    %v278 = vld [vmem:[%s1 + $0x18] sm:$0xf]
    %v279 = vld [vmem:[%s1 + $0x1c] sm:$0xf]
    %v280 = vld [vmem:[%s1 + $0x20] sm:$0xf]
    %v281 = vld [vmem:[%s1 + $0x24] sm:$0xf]
    %v282 = vld [vmem:[%s1 + $0x28] sm:$0xf]
    %v283 = vld [vmem:[%s1 + $0x2c] sm:$0xf]
    %v284 = vld [vmem:[%s1 + $0x30] sm:$0xf]
    %v285 = vld [vmem:[%s1 + $0x34] sm:$0xf]
    %v286 = vld [vmem:[%s1 + $0x38] sm:$0xf]
    %v287 = vld [vmem:[%s1 + $0x3c] sm:$0xf]
    %v304 = vunpack.c.l.b16 %v272
    %v305 = vunpack.c.l.b16 %v273
    %v306 = vunpack.c.l.b16 %v274
    %v307 = vunpack.c.l.b16 %v275
    %v308 = vunpack.c.l.b16 %v276
    %v309 = vunpack.c.l.b16 %v277
    %v310 = vunpack.c.l.b16 %v278
    %v311 = vunpack.c.l.b16 %v279
    %v312 = vunpack.c.l.b16 %v280
    %v313 = vunpack.c.l.b16 %v281
    %v314 = vunpack.c.l.b16 %v282
    %v315 = vunpack.c.l.b16 %v283
    %v316 = vunpack.c.l.b16 %v284
    %v317 = vunpack.c.l.b16 %v285
    %v318 = vunpack.c.l.b16 %v286
    %v319 = vunpack.c.l.b16 %v287
    %v320 = vpack.c.b16 %v305, %v304
    %v321 = vpack.c.b16 %v307, %v306
    %v322 = vpack.c.b16 %v309, %v308
    %v323 = vpack.c.b16 %v311, %v310
    %v324 = vpack.c.b16 %v313, %v312
    %v325 = vpack.c.b16 %v315, %v314
    %v326 = vpack.c.b16 %v317, %v316
    %v327 = vpack.c.b16 %v319, %v318
    %336 = vmatprep.subr.bf16.mxu0 0
    %337 = vmatpush1.bf16.msra.mxu0 %v327
    %338 = vmatprep.subr.bf16.mxu0 0
    %339 = vmatpush1.bf16.msra.mxu0 %v326
    %340 = vmatprep.subr.bf16.mxu0 0
    %341 = vmatpush1.bf16.msra.mxu0 %v325
    %342 = vmatprep.subr.bf16.mxu0 0
    %343 = vmatpush1.bf16.msra.mxu0 %v324
    %344 = vmatprep.subr.bf16.mxu0 0
    %345 = vmatpush1.bf16.msra.mxu0 %v323
    %346 = vmatprep.subr.bf16.mxu0 0
    %347 = vmatpush1.bf16.msra.mxu0 %v322
    %348 = vmatprep.subr.bf16.mxu0 0
    %349 = vmatpush1.bf16.msra.mxu0 %v321
    %350 = vmatprep.subr.bf16.mxu0 0
    %351 = vmatpush1.bf16.msra.mxu0 %v320
    %352 = vmatprep.subr.bf16.mxu0 0
    %353 = vmatpush2.bf16.msra.mxu0 0
    %354 = vmatprep.subr.bf16.mxu0 0
    %355 = vmatpush2.bf16.msra.mxu0 0
    %356 = vmatprep.subr.bf16.mxu0 0
    %357 = vmatpush2.bf16.msra.mxu0 0
    %358 = vmatprep.subr.bf16.mxu0 0
    %359 = vmatpush2.bf16.msra.mxu0 0
    %360 = vmatprep.subr.bf16.mxu0 0
    %361 = vmatpush2.bf16.msra.mxu0 0
    %362 = vmatprep.subr.bf16.mxu0 0
    %363 = vmatpush2.bf16.msra.mxu0 0
    %364 = vmatprep.subr.bf16.mxu0 0
    %365 = vmatpush2.bf16.msra.mxu0 0
    %366 = vmatprep.subr.bf16.mxu0 0
    %367 = vmatpush2.bf16.msra.mxu0 0
    %368 = vmatprep.mubr.bf16.mxu0 0
    %369 = vmatmul.mubr.bf16.gmra.mxu0 %v271
    %v370 = vpop.f32.mrf.mxu0
    %v371 = vadd.f32 0.0, %v370
    %v372 = vpop.f32.mrf.mxu0
    %v373 = vpop.f32.mrf.mxu0
    %v374 = vpop.f32.mrf.mxu0
    %375 = vdwg.mxu0
    %v376 = vlaneseq
    %v377 = vand.u32 %v376, 127
    %v378 = vlaneseq
    %v379 = vshrl.u32 %v378, 7
    %s380 = smul.u32 0, 8
    %v381 = vstv %s380
    %v382 = vadd.s32 %v379, %v381
    %vm383 = vcmp.eq.s32.totalorder %v377, %v382
    %v384 = vsel %vm383, %v371, 0.0
    %vm385 = vcmask 64512
    %v386 = vsel %vm385, %v384, 0.0
    %387 = vadd.xlane.f32.xlu0 %v386
    %v388 = vpop.xlane.xlu0 %387
    %v389 = vsel %vm385, %v371, -inf
    %390 = vmax.xlane.f32.xlu0 %v389
    %v391 = vpop.xlane.xlu0 %390
    %v392 = vsub.f32 %v371, %v391
    %v393 = vmul.f32 %v392, 1.442695
    %v394 = vpow.pop %v393
    %v395 = vsel %vm385, %v394, 0.0
    %396 = vadd.xlane.f32.xlu0 %v395
    %v397 = vpop.xlane.xlu0 %396
    %v398 = vlog2.pop %v397
    %v399 = vmul.f32 %v398, 0.6931472
    %v400 = vadd.f32 %v391, %v399
    %v401 = vsub.f32 %v400, %v388
    %v402 = vrot.slane %v401, 4
    %v403 = vadd.f32 %v401, %v402
    %v404 = vrot.slane %v403, 2
    %v405 = vadd.f32 %v403, %v404
    %v406 = vrot.slane %v405, 1
    %v407 = vadd.f32 %v405, %v406
    %v408 = vmul.f32 %v407, 0.0175
    %409 = vst [vmem:[#allocation5] sm:$0x1] %v408
    // Predicated region
    $region30: #{tpu_custom_call.1} parent=1 // pred_check
      _
    $region31: #{tpu_custom_call.1} parent=1 // pred_check_branch
      %411 = sbr.rel (0) target = $region33
    $region32: #{tpu_custom_call.1} parent=1 // pred_region
      %s413 = ssub.s32 16, 16
      %414 = vsyncadd [#allocation4], %s413
      %s416 = sshll.u32 [#allocation5], 4
      %s417 = int_to_ptr.vmem [resolvable:$true] %s416
      %419 = dma.vmem_to_hbm [thread:$0]  %s417, 16, %s6, [#allocation4]
    $region33: #{tpu_custom_call.1} parent=1 // pred_fallthru
      _
    // Predicated region
    $region34: #{tpu_custom_call.1} parent=1 // pred_check
      _
    $region35: #{tpu_custom_call.1} parent=1 // pred_check_branch
      %421 = sbr.rel (0) target = $region37
    $region36: #{tpu_custom_call.1} parent=1 // pred_region
      %422 = dma.done [#allocation4], 16
    $region37: #{tpu_custom_call.1} parent=1 // pred_fallthru
      _
    %423 = vsyncpa [#allocation3], 1
    %424 = vsyncpa [#allocation4], 1

</llo_original>
